<compile_context>
chip_gen: v6e
topology: v6e:2x2x1
jax: 0.10.0
libtpu: 0.0.40
codegen_flags: <defaults>
</compile_context>

<pallas_src>
import jax
import jax.numpy as jnp
from jax.experimental import pallas as pl
from jax.experimental.pallas import tpu as pltpu

_LANE = 128


def _round_up(x, m):
    return ((x + m - 1) // m) * m


# ------------------------- Pallas kernel (hot path) -------------------------
def _spectral_mix_kernel(are_ref, aim_ref, wre_ref, wim_ref, ore_ref, oim_ref):
    """Complex channel mixing, lane-dense over the frequency axis.

    a_re/a_im : (TB, Cin, TM)      split real/imag of x_ft modes
    w_re/w_im : (Cin, Cout, TM)    Re(w) / Im(w)
    o_re/o_im : (TB, Cout, TM)

    Plain 4-multiply complex product, accumulated one input channel at a time:
        o_re[b,o,m] = sum_i a_re[b,i,m]*w_re[i,o,m] - a_im[b,i,m]*w_im[i,o,m]
        o_im[b,o,m] = sum_i a_re[b,i,m]*w_im[i,o,m] + a_im[b,i,m]*w_re[i,o,m]
    Only two (TB, Cout, TM) accumulators stay live; all ops are lane-parallel VPU
    FMAs (no (TB, Cin, Cout, TM) temporaries, no tiny MXU passes).
    """
    tb, cin, tm = are_ref.shape
    cout = wre_ref.shape[1]

    o_re = jnp.zeros((tb, cout, tm), jnp.float32)
    o_im = jnp.zeros((tb, cout, tm), jnp.float32)

    # Cin is a static Python int at trace time -> fully unrolled, static slices.
    for i in range(cin):
        ar = are_ref[:, pl.ds(i, 1), :]      # (TB, 1, TM)
        ai = aim_ref[:, pl.ds(i, 1), :]
        wr = wre_ref[pl.ds(i, 1), :, :]      # (1, Cout, TM)
        wi = wim_ref[pl.ds(i, 1), :, :]
        o_re = o_re + ar * wr - ai * wi
        o_im = o_im + ar * wi + ai * wr

    ore_ref[...] = o_re.astype(ore_ref.dtype)
    oim_ref[...] = o_im.astype(oim_ref.dtype)


# --------------------------- tiling / VMEM sizing ---------------------------
def _vmem_params():
    """(tile budget bytes, physical VMEM bytes), per TPU generation."""
    try:
        cap = int(pltpu.get_tpu_info().vmem_capacity_bytes)
    except Exception:  # pragma: no cover - fall back to the smallest (v7x) part
        cap = 64 << 20
    if cap <= (64 << 20):          # v7x: 64 MiB physical / 32 MiB scoped default
        return 20 << 20, cap
    return 48 << 20, cap           # v5e / v6e: 128 MiB physical


def _per_lane_bytes(tb, cin, cout):
    """f32 VMEM bytes per lane of TM, with sublane (x8) padding accounted for."""
    cin8 = max(_round_up(cin, 8), 8)
    cout8 = max(_round_up(cout, 8), 8)
    # double-buffered blocks: a_re, a_im (TB,Cin,·), w_re, w_im (Cin,Cout,·),
    # o_re, o_im (TB,Cout,·)
    blocks = 2 * (2 * tb * cin8 + 2 * cin * cout8 + 2 * tb * cout8)
    # in-kernel live values: 2 accumulators + ~2 product temporaries (TB,Cout,·)
    live = 4 * tb * cout8
    return 4 * (blocks + live)


def _choose_tiles(m_pad, b, cin, cout, budget_bytes):
    """Pick (tb, tm): batch block and lane tile (multiple of 128, dividing m_pad)."""
    # Cap tm so the M grid axis has >=2 steps (DMA/compute overlap; shards across
    # v7x's two TensorCores), >=4 steps when there is room for fat tiles too.
    max_tm = m_pad
    if m_pad >= 2 * _LANE:
        max_tm = m_pad // 2
    if m_pad >= 8 * _LANE:
        max_tm = min(max_tm, m_pad // 4)

    for tb in [d for d in range(b, 0, -1) if b % d == 0]:
        per_lane = _per_lane_bytes(tb, cin, cout)
        best_tm = 0
        tm = _LANE
        while tm <= max_tm:
            if m_pad % tm == 0 and per_lane * tm <= budget_bytes:
                best_tm = tm
            tm += _LANE
        if best_tm:
            return tb, best_tm
    # Extreme shapes: smallest tiles; vmem_limit is raised toward physical below.
    return 1, _LANE


def _spectral_mix_pallas(a_re, a_im, w_re, w_im):
    B, Cin, M_pad = a_re.shape
    Cout = w_re.shape[1]

    budget, vmem_cap = _vmem_params()
    tb, tm = _choose_tiles(M_pad, B, Cin, Cout, budget)
    grid = (B // tb, M_pad // tm)

    a_spec = pl.BlockSpec((tb, Cin, tm), lambda bi, mi: (bi, 0, mi))
    w_spec = pl.BlockSpec((Cin, Cout, tm), lambda bi, mi: (0, 0, mi))
    o_spec = pl.BlockSpec((tb, Cout, tm), lambda bi, mi: (bi, 0, mi))
    out_sds = jax.ShapeDtypeStruct((B, Cout, M_pad), jnp.float32)

    # Scoped-VMEM limit sized from the chosen tiles (sublane-aware), with headroom
    # for Mosaic internal scratch, and never closer than 8 MiB to physical VMEM.
    need = _per_lane_bytes(tb, Cin, Cout) * tm + (2 << 20)
    vmem_limit = int(max(16 << 20, min(need, vmem_cap - (8 << 20))))

    return pl.pallas_call(
        _spectral_mix_kernel,
        grid=grid,
        in_specs=[a_spec, a_spec, w_spec, w_spec],
        out_specs=(o_spec, o_spec),
        out_shape=(out_sds, out_sds),
        compiler_params=pltpu.CompilerParams(
            dimension_semantics=("parallel", "parallel"),
            vmem_limit_bytes=vmem_limit,
        ),
    )(a_re, a_im, w_re, w_im)


# ------------------------------ Module wrapper ------------------------------
def prepare_spectral_weights(weights1, weights2):
    """One-time weight preprocessing (hoisted out of the per-call forward).

    weights1/2 : (Cin, Cout, modes1, modes2, 2)  (last dim = [real, imag])
    returns    : w_re_pad, w_im_pad of shape (Cin, Cout, M_pad), f32,
                 with M = 2*modes1*modes2 zero-padded to a multiple of 128.
    """
    Cin, Cout, m1, m2, _ = weights1.shape
    Mblk = m1 * m2
    M = 2 * Mblk
    w_re = jnp.concatenate([weights1[..., 0].reshape(Cin, Cout, Mblk),
                            weights2[..., 0].reshape(Cin, Cout, Mblk)],
                           axis=-1).astype(jnp.float32)
    w_im = jnp.concatenate([weights1[..., 1].reshape(Cin, Cout, Mblk),
                            weights2[..., 1].reshape(Cin, Cout, Mblk)],
                           axis=-1).astype(jnp.float32)
    M_pad = _round_up(M, _LANE)
    pad = M_pad - M
    if pad:
        cfg = ((0, 0), (0, 0), (0, pad))
        w_re = jnp.pad(w_re, cfg)
        w_im = jnp.pad(w_im, cfg)
    return w_re, w_im


def spectral_conv2d_prepared(x, w_re_pad, w_im_pad, modes1, modes2):
    """Forward pass with pre-processed (padded, lane-dense) weights.

    x         : (B, Cin, H, W) float32 (NCHW, matching PyTorch)
    w_re_pad  : (Cin, Cout, M_pad) float32
    w_im_pad  : (Cin, Cout, M_pad) float32
    returns   : (B, Cout, H, W) float32
    """
    B, Cin, H, W = x.shape
    Cout = w_re_pad.shape[1]
    Wf = W // 2 + 1
    Mblk = modes1 * modes2
    M = 2 * Mblk
    M_pad = w_re_pad.shape[-1]

    # torch.rfft(x, 2, normalized=True, onesided=True)
    x_ft = jnp.fft.rfft2(x, norm='ortho')  # (B, Cin, H, Wf) complex64

    # Natural layout, no transposes: fold (m1, m2) onto the last (lane) axis and
    # stack the two frequency blocks along it.
    a_top = x_ft[:, :, :modes1, :modes2].reshape(B, Cin, Mblk)
    a_bot = x_ft[:, :, H - modes1:, :modes2].reshape(B, Cin, Mblk)
    a = jnp.concatenate([a_top, a_bot], axis=-1)           # (B, Cin, M) complex64
    a_re = jnp.real(a).astype(jnp.float32)
    a_im = jnp.imag(a).astype(jnp.float32)

    pad = M_pad - M
    if pad:
        cfg = ((0, 0), (0, 0), (0, pad))
        a_re = jnp.pad(a_re, cfg)
        a_im = jnp.pad(a_im, cfg)

    o_re, o_im = _spectral_mix_pallas(a_re, a_im, w_re_pad, w_im_pad)

    o = (o_re[:, :, :M] + 1j * o_im[:, :, :M]).astype(jnp.complex64)
    out_top = o[:, :, :Mblk].reshape(B, Cout, modes1, modes2)
    out_bot = o[:, :, Mblk:].reshape(B, Cout, modes1, modes2)

    # Note: the PyTorch reference allocates out_ft with in_channels; equivalent
    # here because the module is only used with Cin == Cout.
    out_ft = jnp.zeros((B, Cout, H, Wf), dtype=jnp.complex64)
    out_ft = out_ft.at[:, :, :modes1, :modes2].set(out_top)
    out_ft = out_ft.at[:, :, H - modes1:, :modes2].set(out_bot)

    # torch.irfft(out_ft, 2, normalized=True, onesided=True, signal_sizes=(H, W))
    return jnp.fft.irfft2(out_ft, s=(H, W), norm='ortho').astype(jnp.float32)


def spectral_conv2d(x, weights1, weights2, modes1, modes2):
    """Drop-in compatible forward (does the weight preprocessing internally).

    For steady-state training/inference prefer prepare_spectral_weights() once +
    spectral_conv2d_prepared() per call.
    """
    w_re_pad, w_im_pad = prepare_spectral_weights(weights1, weights2)
    return spectral_conv2d_prepared(x, w_re_pad, w_im_pad, modes1, modes2)


# --------------------------- pure-JAX reference -----------------------------
def _reference(x, weights1, weights2, modes1, modes2):
    B, Cin, H, W = x.shape
    Cout = weights1.shape[1]
    Wf = W // 2 + 1
    x_ft = jnp.fft.rfft2(x, norm='ortho')
    w1 = weights1[..., 0] + 1j * weights1[..., 1]
    w2 = weights2[..., 0] + 1j * weights2[..., 1]
    out_ft = jnp.zeros((B, Cout, H, Wf), dtype=jnp.complex64)
    out_ft = out_ft.at[:, :, :modes1, :modes2].set(
        jnp.einsum('bixy,ioxy->boxy', x_ft[:, :, :modes1, :modes2], w1))
    out_ft = out_ft.at[:, :, H - modes1:, :modes2].set(
        jnp.einsum('bixy,ioxy->boxy', x_ft[:, :, H - modes1:, :modes2], w2))
    return jnp.fft.irfft2(out_ft, s=(H, W), norm='ortho')


if __name__ == "__main__":
    # small shapes consistent with the module: batch=2, in=out channels=4,
    # spatial 16x16, modes1=modes2=4
    B, Cin, Cout, H, W = 2, 4, 4, 16, 16
    modes1, modes2 = 4, 4

    key = jax.random.PRNGKey(0)
    kx, k1, k2 = jax.random.split(key, 3)

    x = jax.random.normal(kx, (B, Cin, H, W), dtype=jnp.float32)

    scale = 1.0 / (Cin * Cout)
    weights1 = scale * jax.random.uniform(k1, (Cin, Cout, modes1, modes2, 2),
                                          dtype=jnp.float32)
    weights2 = scale * jax.random.uniform(k2, (Cin, Cout, modes1, modes2, 2),
                                          dtype=jnp.float32)

    # Recommended path: preprocess weights once, reuse every forward call.
    w_re_pad, w_im_pad = prepare_spectral_weights(weights1, weights2)
    fwd = jax.jit(spectral_conv2d_prepared, static_argnums=(3, 4))
    out = fwd(x, w_re_pad, w_im_pad, modes1, modes2)
    out = jax.block_until_ready(out)

    # Drop-in compatible path (preprocessing inside), exercised once as well.
    out_compat = jax.jit(spectral_conv2d, static_argnums=(3, 4))(
        x, weights1, weights2, modes1, modes2)
    out_compat = jax.block_until_ready(out_compat)

    ref = _reference(x, weights1, weights2, modes1, modes2)
    assert out.shape == (B, Cout, H, W)
    assert jnp.allclose(out, ref, atol=1e-5, rtol=1e-5)
    assert jnp.allclose(out_compat, ref, atol=1e-5, rtol=1e-5)

    print("KERNEL_OK")
</pallas_src>

<mosaic_0001>
module attributes {stable_mosaic.version = 11 : i64} {
  func.func @_spectral_mix_kernel(%arg0: i32, %arg1: i32, %arg2: memref<2x4x128xf32, #tpu.memory_space<vmem>>, %arg3: memref<2x4x128xf32, #tpu.memory_space<vmem>>, %arg4: memref<4x4x128xf32, #tpu.memory_space<vmem>>, %arg5: memref<4x4x128xf32, #tpu.memory_space<vmem>>, %arg6: memref<2x4x128xf32, #tpu.memory_space<vmem>>, %arg7: memref<2x4x128xf32, #tpu.memory_space<vmem>>) attributes {dimension_semantics = [#tpu.dimension_semantics<parallel>, #tpu.dimension_semantics<parallel>], iteration_bounds = array<i64: 1, 1>, scalar_prefetch = 0 : i64, scratch_operands = 0 : i64, tpu.core_type = #tpu.core_type<tc>, window_params = [{transform_indices = @transform_0, window_bounds = array<i64: 2, 4, 128>}, {transform_indices = @transform_1, window_bounds = array<i64: 2, 4, 128>}, {transform_indices = @transform_2, window_bounds = array<i64: 4, 4, 128>}, {transform_indices = @transform_3, window_bounds = array<i64: 4, 4, 128>}, {transform_indices = @transform_4, window_bounds = array<i64: 2, 4, 128>}, {transform_indices = @transform_5, window_bounds = array<i64: 2, 4, 128>}]} {
    %cst = arith.constant 0.000000e+00 : f32
    %0 = vector.broadcast %cst : f32 to vector<2x4x128xf32>
    %cst_0 = arith.constant 0.000000e+00 : f32
    %1 = vector.broadcast %cst_0 : f32 to vector<2x4x128xf32>
    %c0 = arith.constant 0 : index
    %c0_1 = arith.constant 0 : index
    %c0_2 = arith.constant 0 : index
    %2 = vector.load %arg2[%c0, %c0_1, %c0_2] : memref<2x4x128xf32, #tpu.memory_space<vmem>>, vector<2x1x128xf32>
    %c0_3 = arith.constant 0 : index
    %c0_4 = arith.constant 0 : index
    %c0_5 = arith.constant 0 : index
    %3 = vector.load %arg3[%c0_3, %c0_4, %c0_5] : memref<2x4x128xf32, #tpu.memory_space<vmem>>, vector<2x1x128xf32>
    %c0_6 = arith.constant 0 : index
    %c0_7 = arith.constant 0 : index
    %c0_8 = arith.constant 0 : index
    %4 = vector.load %arg4[%c0_6, %c0_7, %c0_8] : memref<4x4x128xf32, #tpu.memory_space<vmem>>, vector<1x4x128xf32>
    %c0_9 = arith.constant 0 : index
    %c0_10 = arith.constant 0 : index
    %c0_11 = arith.constant 0 : index
    %5 = vector.load %arg5[%c0_9, %c0_10, %c0_11] : memref<4x4x128xf32, #tpu.memory_space<vmem>>, vector<1x4x128xf32>
    %6 = vector.broadcast %2 : vector<2x1x128xf32> to vector<2x4x128xf32>
    %7 = vector.broadcast %4 : vector<1x4x128xf32> to vector<2x4x128xf32>
    %8 = arith.mulf %6, %7 : vector<2x4x128xf32>
    %9 = arith.addf %0, %8 : vector<2x4x128xf32>
    %10 = vector.broadcast %3 : vector<2x1x128xf32> to vector<2x4x128xf32>
    %11 = vector.broadcast %5 : vector<1x4x128xf32> to vector<2x4x128xf32>
    %12 = arith.mulf %10, %11 : vector<2x4x128xf32>
    %13 = arith.subf %9, %12 : vector<2x4x128xf32>
    %14 = vector.broadcast %2 : vector<2x1x128xf32> to vector<2x4x128xf32>
    %15 = vector.broadcast %5 : vector<1x4x128xf32> to vector<2x4x128xf32>
    %16 = arith.mulf %14, %15 : vector<2x4x128xf32>
    %17 = arith.addf %1, %16 : vector<2x4x128xf32>
    %18 = vector.broadcast %3 : vector<2x1x128xf32> to vector<2x4x128xf32>
    %19 = vector.broadcast %4 : vector<1x4x128xf32> to vector<2x4x128xf32>
    %20 = arith.mulf %18, %19 : vector<2x4x128xf32>
    %21 = arith.addf %17, %20 : vector<2x4x128xf32>
    %c0_12 = arith.constant 0 : index
    %c1 = arith.constant 1 : index
    %c0_13 = arith.constant 0 : index
    %22 = vector.load %arg2[%c0_12, %c1, %c0_13] : memref<2x4x128xf32, #tpu.memory_space<vmem>>, vector<2x1x128xf32>
    %c0_14 = arith.constant 0 : index
    %c1_15 = arith.constant 1 : index
    %c0_16 = arith.constant 0 : index
    %23 = vector.load %arg3[%c0_14, %c1_15, %c0_16] : memref<2x4x128xf32, #tpu.memory_space<vmem>>, vector<2x1x128xf32>
    %c1_17 = arith.constant 1 : index
    %c0_18 = arith.constant 0 : index
    %c0_19 = arith.constant 0 : index
    %24 = vector.load %arg4[%c1_17, %c0_18, %c0_19] : memref<4x4x128xf32, #tpu.memory_space<vmem>>, vector<1x4x128xf32>
    %c1_20 = arith.constant 1 : index
    %c0_21 = arith.constant 0 : index
    %c0_22 = arith.constant 0 : index
    %25 = vector.load %arg5[%c1_20, %c0_21, %c0_22] : memref<4x4x128xf32, #tpu.memory_space<vmem>>, vector<1x4x128xf32>
    %26 = vector.broadcast %22 : vector<2x1x128xf32> to vector<2x4x128xf32>
    %27 = vector.broadcast %24 : vector<1x4x128xf32> to vector<2x4x128xf32>
    %28 = arith.mulf %26, %27 : vector<2x4x128xf32>
    %29 = arith.addf %13, %28 : vector<2x4x128xf32>
    %30 = vector.broadcast %23 : vector<2x1x128xf32> to vector<2x4x128xf32>
    %31 = vector.broadcast %25 : vector<1x4x128xf32> to vector<2x4x128xf32>
    %32 = arith.mulf %30, %31 : vector<2x4x128xf32>
    %33 = arith.subf %29, %32 : vector<2x4x128xf32>
    %34 = vector.broadcast %22 : vector<2x1x128xf32> to vector<2x4x128xf32>
    %35 = vector.broadcast %25 : vector<1x4x128xf32> to vector<2x4x128xf32>
    %36 = arith.mulf %34, %35 : vector<2x4x128xf32>
    %37 = arith.addf %21, %36 : vector<2x4x128xf32>
    %38 = vector.broadcast %23 : vector<2x1x128xf32> to vector<2x4x128xf32>
    %39 = vector.broadcast %24 : vector<1x4x128xf32> to vector<2x4x128xf32>
    %40 = arith.mulf %38, %39 : vector<2x4x128xf32>
    %41 = arith.addf %37, %40 : vector<2x4x128xf32>
    %c0_23 = arith.constant 0 : index
    %c2 = arith.constant 2 : index
    %c0_24 = arith.constant 0 : index
    %42 = vector.load %arg2[%c0_23, %c2, %c0_24] : memref<2x4x128xf32, #tpu.memory_space<vmem>>, vector<2x1x128xf32>
    %c0_25 = arith.constant 0 : index
    %c2_26 = arith.constant 2 : index
    %c0_27 = arith.constant 0 : index
    %43 = vector.load %arg3[%c0_25, %c2_26, %c0_27] : memref<2x4x128xf32, #tpu.memory_space<vmem>>, vector<2x1x128xf32>
    %c2_28 = arith.constant 2 : index
    %c0_29 = arith.constant 0 : index
    %c0_30 = arith.constant 0 : index
    %44 = vector.load %arg4[%c2_28, %c0_29, %c0_30] : memref<4x4x128xf32, #tpu.memory_space<vmem>>, vector<1x4x128xf32>
    %c2_31 = arith.constant 2 : index
    %c0_32 = arith.constant 0 : index
    %c0_33 = arith.constant 0 : index
    %45 = vector.load %arg5[%c2_31, %c0_32, %c0_33] : memref<4x4x128xf32, #tpu.memory_space<vmem>>, vector<1x4x128xf32>
    %46 = vector.broadcast %42 : vector<2x1x128xf32> to vector<2x4x128xf32>
    %47 = vector.broadcast %44 : vector<1x4x128xf32> to vector<2x4x128xf32>
    %48 = arith.mulf %46, %47 : vector<2x4x128xf32>
    %49 = arith.addf %33, %48 : vector<2x4x128xf32>
    %50 = vector.broadcast %43 : vector<2x1x128xf32> to vector<2x4x128xf32>
    %51 = vector.broadcast %45 : vector<1x4x128xf32> to vector<2x4x128xf32>
    %52 = arith.mulf %50, %51 : vector<2x4x128xf32>
    %53 = arith.subf %49, %52 : vector<2x4x128xf32>
    %54 = vector.broadcast %42 : vector<2x1x128xf32> to vector<2x4x128xf32>
    %55 = vector.broadcast %45 : vector<1x4x128xf32> to vector<2x4x128xf32>
    %56 = arith.mulf %54, %55 : vector<2x4x128xf32>
    %57 = arith.addf %41, %56 : vector<2x4x128xf32>
    %58 = vector.broadcast %43 : vector<2x1x128xf32> to vector<2x4x128xf32>
    %59 = vector.broadcast %44 : vector<1x4x128xf32> to vector<2x4x128xf32>
    %60 = arith.mulf %58, %59 : vector<2x4x128xf32>
    %61 = arith.addf %57, %60 : vector<2x4x128xf32>
    %c0_34 = arith.constant 0 : index
    %c3 = arith.constant 3 : index
    %c0_35 = arith.constant 0 : index
    %62 = vector.load %arg2[%c0_34, %c3, %c0_35] : memref<2x4x128xf32, #tpu.memory_space<vmem>>, vector<2x1x128xf32>
    %c0_36 = arith.constant 0 : index
    %c3_37 = arith.constant 3 : index
    %c0_38 = arith.constant 0 : index
    %63 = vector.load %arg3[%c0_36, %c3_37, %c0_38] : memref<2x4x128xf32, #tpu.memory_space<vmem>>, vector<2x1x128xf32>
    %c3_39 = arith.constant 3 : index
    %c0_40 = arith.constant 0 : index
    %c0_41 = arith.constant 0 : index
    %64 = vector.load %arg4[%c3_39, %c0_40, %c0_41] : memref<4x4x128xf32, #tpu.memory_space<vmem>>, vector<1x4x128xf32>
    %c3_42 = arith.constant 3 : index
    %c0_43 = arith.constant 0 : index
    %c0_44 = arith.constant 0 : index
    %65 = vector.load %arg5[%c3_42, %c0_43, %c0_44] : memref<4x4x128xf32, #tpu.memory_space<vmem>>, vector<1x4x128xf32>
    %66 = vector.broadcast %62 : vector<2x1x128xf32> to vector<2x4x128xf32>
    %67 = vector.broadcast %64 : vector<1x4x128xf32> to vector<2x4x128xf32>
    %68 = arith.mulf %66, %67 : vector<2x4x128xf32>
    %69 = arith.addf %53, %68 : vector<2x4x128xf32>
    %70 = vector.broadcast %63 : vector<2x1x128xf32> to vector<2x4x128xf32>
    %71 = vector.broadcast %65 : vector<1x4x128xf32> to vector<2x4x128xf32>
    %72 = arith.mulf %70, %71 : vector<2x4x128xf32>
    %73 = arith.subf %69, %72 : vector<2x4x128xf32>
    %74 = vector.broadcast %62 : vector<2x1x128xf32> to vector<2x4x128xf32>
    %75 = vector.broadcast %65 : vector<1x4x128xf32> to vector<2x4x128xf32>
    %76 = arith.mulf %74, %75 : vector<2x4x128xf32>
    %77 = arith.addf %61, %76 : vector<2x4x128xf32>
    %78 = vector.broadcast %63 : vector<2x1x128xf32> to vector<2x4x128xf32>
    %79 = vector.broadcast %64 : vector<1x4x128xf32> to vector<2x4x128xf32>
    %80 = arith.mulf %78, %79 : vector<2x4x128xf32>
    %81 = arith.addf %77, %80 : vector<2x4x128xf32>
    %c0_45 = arith.constant 0 : index
    %c0_46 = arith.constant 0 : index
    %c0_47 = arith.constant 0 : index
    %82 = vector.load %arg6[%c0_45, %c0_46, %c0_47] : memref<2x4x128xf32, #tpu.memory_space<vmem>>, vector<2x4x128xf32>
    tpu.vector_store %arg6[%c0_45, %c0_46, %c0_47], %73 {strides = array<i32>} : memref<2x4x128xf32, #tpu.memory_space<vmem>>, vector<2x4x128xf32>,
    %c0_48 = arith.constant 0 : index
    %c0_49 = arith.constant 0 : index
    %c0_50 = arith.constant 0 : index
    %83 = vector.load %arg7[%c0_48, %c0_49, %c0_50] : memref<2x4x128xf32, #tpu.memory_space<vmem>>, vector<2x4x128xf32>
    tpu.vector_store %arg7[%c0_48, %c0_49, %c0_50], %81 {strides = array<i32>} : memref<2x4x128xf32, #tpu.memory_space<vmem>>, vector<2x4x128xf32>,
    return
  }
  func.func @transform_0(%arg0: i32, %arg1: i32) -> (i32, i32, i32) {
    %c0_i32 = arith.constant 0 : i32
    %c0_i32_0 = arith.constant 0 : i32
    return %arg0, %c0_i32, %arg1 : i32, i32, i32
  }
  func.func @transform_1(%arg0: i32, %arg1: i32) -> (i32, i32, i32) {
    %c0_i32 = arith.constant 0 : i32
    %c0_i32_0 = arith.constant 0 : i32
    return %arg0, %c0_i32, %arg1 : i32, i32, i32
  }
  func.func @transform_2(%arg0: i32, %arg1: i32) -> (i32, i32, i32) {
    %c0_i32 = arith.constant 0 : i32
    %c0_i32_0 = arith.constant 0 : i32
    %c0_i32_1 = arith.constant 0 : i32
    return %c0_i32, %c0_i32_0, %arg1 : i32, i32, i32
  }
  func.func @transform_3(%arg0: i32, %arg1: i32) -> (i32, i32, i32) {
    %c0_i32 = arith.constant 0 : i32
    %c0_i32_0 = arith.constant 0 : i32
    %c0_i32_1 = arith.constant 0 : i32
    return %c0_i32, %c0_i32_0, %arg1 : i32, i32, i32
  }
  func.func @transform_4(%arg0: i32, %arg1: i32) -> (i32, i32, i32) {
    %c0_i32 = arith.constant 0 : i32
    %c0_i32_0 = arith.constant 0 : i32
    return %arg0, %c0_i32, %arg1 : i32, i32, i32
  }
  func.func @transform_5(%arg0: i32, %arg1: i32) -> (i32, i32, i32) {
    %c0_i32 = arith.constant 0 : i32
    %c0_i32_0 = arith.constant 0 : i32
    return %arg0, %c0_i32, %arg1 : i32, i32, i32
  }
}

</mosaic_0001>

<llo_original>
// kernel: spectral_conv2d_prepared.1
$region0: #{spectral_conv2d_prepared.1}
  #allocation0 [shape = 'u32[]', space=smem, size = 0x4, offset = 0x4, fixed_abs, tag = 'smem constant byte address 0x4 - core index']
  #allocation1 [shape = 'u32[144,128]{1,0:T(1,128)}', space=vmem, size = 0x12000, scoped, tag = 'internal scratch']
  %s0 = inlined_call_operand.vmem [shape: f32[2,4,128], index: 0, kind: input, shape index: {}]
  %s1 = inlined_call_operand.vmem [shape: f32[2,4,128], index: 1, kind: input, shape index: {}]
  %s2 = inlined_call_operand.vmem [shape: f32[4,4,128], index: 2, kind: input, shape index: {}]
  %s3 = inlined_call_operand.vmem [shape: f32[4,4,128], index: 3, kind: input, shape index: {}]
  %s4 = inlined_call_operand.vmem [shape: f32[2,4,128], index: 4, kind: output, shape index: {0}]
  %s5 = inlined_call_operand.vmem [shape: f32[2,4,128], index: 5, kind: output, shape index: {1}]
  %6 = xla_tuple %s4, %s5
  %s7 = sld [smem:[#allocation0]]
  $region34: #{spectral_conv2d_prepared.1} parent=0
    _
  %s9 = ssub.s32 1, %s7
  %s10 = scalar_select 0, %s9, %s7
  // Predicated region
  $region2: #{spectral_conv2d_prepared.1} parent=0 // pred_check
    _
  $region3: #{spectral_conv2d_prepared.1} parent=0 // pred_check_branch
    %12 = sbr.rel (0) target = $region5
  $region4: #{spectral_conv2d_prepared.1} parent=0 // pred_region
    _
  $region5: #{spectral_conv2d_prepared.1} parent=0 // pred_fallthru
    _
  // Predicated region
  $region6: #{spectral_conv2d_prepared.1} parent=0 // pred_check
    _
  $region7: #{spectral_conv2d_prepared.1} parent=0 // pred_check_branch
    %14 = sbr.rel (0) target = $region9
  $region8: #{spectral_conv2d_prepared.1} parent=0 // pred_region
    _
  $region9: #{spectral_conv2d_prepared.1} parent=0 // pred_fallthru
    _
  // Predicated region
  $region10: #{spectral_conv2d_prepared.1} parent=0 // pred_check
    _
  $region11: #{spectral_conv2d_prepared.1} parent=0 // pred_check_branch
    %16 = sbr.rel (0) target = $region13
  $region12: #{spectral_conv2d_prepared.1} parent=0 // pred_region
    _
  $region13: #{spectral_conv2d_prepared.1} parent=0 // pred_fallthru
    _
  // Predicated region
  $region14: #{spectral_conv2d_prepared.1} parent=0 // pred_check
    _
  $region15: #{spectral_conv2d_prepared.1} parent=0 // pred_check_branch
    %18 = sbr.rel (0) target = $region17
  $region16: #{spectral_conv2d_prepared.1} parent=0 // pred_region
    _
  $region17: #{spectral_conv2d_prepared.1} parent=0 // pred_fallthru
    _
  %v19 = vld [vmem:[%s0] sm:$0x1]
  %v20 = vld [vmem:[%s0 + $0x4] sm:$0x1]
  %v21 = vld [vmem:[%s1] sm:$0x1]
  %v22 = vld [vmem:[%s1 + $0x4] sm:$0x1]
  %v23 = vld [vmem:[%s2] sm:$0xf]
  %v24 = vld [vmem:[%s3] sm:$0xf]
  %v25 = vlaneseq
  %v26 = vshrl.u32 %v25, 7
  %v27 = vsub.s32 0, %v26
  %v28 = vrot.slane %v19, %v27
  %v29 = vlaneseq
  %v30 = vshrl.u32 %v29, 7
  %v31 = vsub.s32 0, %v30
  %v32 = vrot.slane %v20, %v31
  %v33 = vmul.f32 %v28, %v23
  %v34 = vmul.f32 %v32, %v23
  %v35 = vadd.f32 %v33, 0.0
  %v36 = vadd.f32 %v34, 0.0
  %v37 = vlaneseq
  %v38 = vshrl.u32 %v37, 7
  %v39 = vsub.s32 0, %v38
  %v40 = vrot.slane %v21, %v39
  %v41 = vlaneseq
  %v42 = vshrl.u32 %v41, 7
  %v43 = vsub.s32 0, %v42
  %v44 = vrot.slane %v22, %v43
  %v45 = vmul.f32 %v40, %v24
  %v46 = vmul.f32 %v44, %v24
  %v47 = vsub.f32 %v35, %v45
  %v48 = vsub.f32 %v36, %v46
  %v49 = vmul.f32 %v28, %v24
  %v50 = vmul.f32 %v32, %v24
  %v51 = vadd.f32 %v49, 0.0
  %v52 = vadd.f32 %v50, 0.0
  %v53 = vmul.f32 %v40, %v23
  %v54 = vmul.f32 %v44, %v23
  %v55 = vadd.f32 %v51, %v53
  %v56 = vadd.f32 %v52, %v54
  %v57 = vld [vmem:[%s0 + $0x1] sm:$0x1]
  %v58 = vld [vmem:[%s0 + $0x5] sm:$0x1]
  %v59 = vld [vmem:[%s1 + $0x1] sm:$0x1]
  %v60 = vld [vmem:[%s1 + $0x5] sm:$0x1]
  %s61 = scalar_lea.vmem %s2, 4
  %v62 = vld [vmem:[%s61] sm:$0xf]
  %s63 = scalar_lea.vmem %s3, 4
  %v64 = vld [vmem:[%s63] sm:$0xf]
  %v65 = vlaneseq
  %v66 = vshrl.u32 %v65, 7
  %v67 = vsub.s32 0, %v66
  %v68 = vrot.slane %v57, %v67
  %v69 = vlaneseq
  %v70 = vshrl.u32 %v69, 7
  %v71 = vsub.s32 0, %v70
  %v72 = vrot.slane %v58, %v71
  %v73 = vmul.f32 %v68, %v62
  %v74 = vmul.f32 %v72, %v62
  %v75 = vadd.f32 %v47, %v73
  %v76 = vadd.f32 %v48, %v74
  %v77 = vlaneseq
  %v78 = vshrl.u32 %v77, 7
  %v79 = vsub.s32 0, %v78
  %v80 = vrot.slane %v59, %v79
  %v81 = vlaneseq
  %v82 = vshrl.u32 %v81, 7
  %v83 = vsub.s32 0, %v82
  %v84 = vrot.slane %v60, %v83
  %v85 = vmul.f32 %v80, %v64
  %v86 = vmul.f32 %v84, %v64
  %v87 = vsub.f32 %v75, %v85
  %v88 = vsub.f32 %v76, %v86
  %v89 = vmul.f32 %v68, %v64
  %v90 = vmul.f32 %v72, %v64
  %v91 = vadd.f32 %v55, %v89
  %v92 = vadd.f32 %v56, %v90
  %v93 = vmul.f32 %v80, %v62
  %v94 = vmul.f32 %v84, %v62
  %v95 = vadd.f32 %v91, %v93
  %v96 = vadd.f32 %v92, %v94
  %v97 = vld [vmem:[%s0 + $0x2] sm:$0x1]
  %v98 = vld [vmem:[%s0 + $0x6] sm:$0x1]
  %v99 = vld [vmem:[%s1 + $0x2] sm:$0x1]
  %v100 = vld [vmem:[%s1 + $0x6] sm:$0x1]
  %s101 = scalar_lea.vmem %s2, 8
  %v102 = vld [vmem:[%s101] sm:$0xf]
  %s103 = scalar_lea.vmem %s3, 8
  %v104 = vld [vmem:[%s103] sm:$0xf]
  %v105 = vlaneseq
  %v106 = vshrl.u32 %v105, 7
  %v107 = vsub.s32 0, %v106
  %v108 = vrot.slane %v97, %v107
  %v109 = vlaneseq
  %v110 = vshrl.u32 %v109, 7
  %v111 = vsub.s32 0, %v110
  %v112 = vrot.slane %v98, %v111
  %v113 = vmul.f32 %v108, %v102
  %v114 = vmul.f32 %v112, %v102
  %v115 = vadd.f32 %v87, %v113
  %v116 = vadd.f32 %v88, %v114
  %v117 = vlaneseq
  %v118 = vshrl.u32 %v117, 7
  %v119 = vsub.s32 0, %v118
  %v120 = vrot.slane %v99, %v119
  %v121 = vlaneseq
  %v122 = vshrl.u32 %v121, 7
  %v123 = vsub.s32 0, %v122
  %v124 = vrot.slane %v100, %v123
  %v125 = vmul.f32 %v120, %v104
  %v126 = vmul.f32 %v124, %v104
  %v127 = vsub.f32 %v115, %v125
  %v128 = vsub.f32 %v116, %v126
  %v129 = vmul.f32 %v108, %v104
  %v130 = vmul.f32 %v112, %v104
  %v131 = vadd.f32 %v95, %v129
  %v132 = vadd.f32 %v96, %v130
  %v133 = vmul.f32 %v120, %v102
  %v134 = vmul.f32 %v124, %v102
  %v135 = vadd.f32 %v131, %v133
  %v136 = vadd.f32 %v132, %v134
  %v137 = vld [vmem:[%s0 + $0x3] sm:$0x1]
  %v138 = vld [vmem:[%s0 + $0x7] sm:$0x1]
  %v139 = vld [vmem:[%s1 + $0x3] sm:$0x1]
  %v140 = vld [vmem:[%s1 + $0x7] sm:$0x1]
  %s141 = scalar_lea.vmem %s2, 12
  %v142 = vld [vmem:[%s141] sm:$0xf]
  %s143 = scalar_lea.vmem %s3, 12
  %v144 = vld [vmem:[%s143] sm:$0xf]
  %v145 = vlaneseq
  %v146 = vshrl.u32 %v145, 7
  %v147 = vsub.s32 0, %v146
  %v148 = vrot.slane %v137, %v147
  %v149 = vlaneseq
  %v150 = vshrl.u32 %v149, 7
  %v151 = vsub.s32 0, %v150
  %v152 = vrot.slane %v138, %v151
  %v153 = vmul.f32 %v148, %v142
  %v154 = vmul.f32 %v152, %v142
  %v155 = vadd.f32 %v127, %v153
  %v156 = vadd.f32 %v128, %v154
  %v157 = vlaneseq
  %v158 = vshrl.u32 %v157, 7
  %v159 = vsub.s32 0, %v158
  %v160 = vrot.slane %v139, %v159
  %v161 = vlaneseq
  %v162 = vshrl.u32 %v161, 7
  %v163 = vsub.s32 0, %v162
  %v164 = vrot.slane %v140, %v163
  %v165 = vmul.f32 %v160, %v144
  %v166 = vmul.f32 %v164, %v144
  %v167 = vsub.f32 %v155, %v165
  %v168 = vsub.f32 %v156, %v166
  %v169 = vmul.f32 %v148, %v144
  %v170 = vmul.f32 %v152, %v144
  %v171 = vadd.f32 %v135, %v169
  %v172 = vadd.f32 %v136, %v170
  %v173 = vmul.f32 %v160, %v142
  %v174 = vmul.f32 %v164, %v142
  %v175 = vadd.f32 %v171, %v173
  %v176 = vadd.f32 %v172, %v174
  %177 = vst [vmem:[%s4] sm:$0xf] %v167
  %178 = vst [vmem:[%s4 + $0x4] sm:$0xf] %v168
  %179 = vst [vmem:[%s5] sm:$0xf] %v175
  %180 = vst [vmem:[%s5 + $0x4] sm:$0xf] %v176
  // Predicated region
  $region18: #{spectral_conv2d_prepared.1} parent=0 // pred_check
    _
  $region19: #{spectral_conv2d_prepared.1} parent=0 // pred_check_branch
    %182 = sbr.rel (0) target = $region21
  $region20: #{spectral_conv2d_prepared.1} parent=0 // pred_region
    _
  $region21: #{spectral_conv2d_prepared.1} parent=0 // pred_fallthru
    _
  // Predicated region
  $region22: #{spectral_conv2d_prepared.1} parent=0 // pred_check
    _
  $region23: #{spectral_conv2d_prepared.1} parent=0 // pred_check_branch
    %184 = sbr.rel (0) target = $region25
  $region24: #{spectral_conv2d_prepared.1} parent=0 // pred_region
    _
  $region25: #{spectral_conv2d_prepared.1} parent=0 // pred_fallthru
    _
  // Predicated region
  $region26: #{spectral_conv2d_prepared.1} parent=0 // pred_check
    _
  $region27: #{spectral_conv2d_prepared.1} parent=0 // pred_check_branch
    %186 = sbr.rel (0) target = $region29
  $region28: #{spectral_conv2d_prepared.1} parent=0 // pred_region
    _
  $region29: #{spectral_conv2d_prepared.1} parent=0 // pred_fallthru
    _
  // Predicated region
  $region30: #{spectral_conv2d_prepared.1} parent=0 // pred_check
    _
  $region31: #{spectral_conv2d_prepared.1} parent=0 // pred_check_branch
    %188 = sbr.rel (0) target = $region33
  $region32: #{spectral_conv2d_prepared.1} parent=0 // pred_region
    _
  $region33: #{spectral_conv2d_prepared.1} parent=0 // pred_fallthru
    _

// kernel: reverse.1
$region0: #{reverse.1}
  %s0 = inlined_call_operand.vmem [shape: f32[2,4,16,7], index: 0, kind: input, shape index: {}]
  %s1 = inlined_call_operand.vmem [shape: f32[2,4,16,7], index: 1, kind: output, shape index: {}]
  $region1: #{reverse.1} parent=0
    #allocation0 [shape = 'u8[65536]{0}', space=vmem, size = 0x10000, scoped, tag = 'operand span for operand 0']
    #allocation1 [shape = 'u8[32768]{0}', space=vmem, size = 0x8000, scoped, tag = 'operand span for operand 1']
    %s2 = scalar_lea.vmem [#allocation0], 8
    // Predicated region
    $region2: #{reverse.1} parent=1 // pred_check
      _
    $region3: #{reverse.1} parent=1 // pred_check_branch
      %4 = sbr.rel (0) target = $region5
    $region4: #{reverse.1} parent=1 // pred_region
      // Predicated region
      $region6: #{reverse.1} parent=4 // pred_check
        _
      $region7: #{reverse.1} parent=4 // pred_check_branch
        %6 = sbr.rel (0) target = $region9
      $region8: #{reverse.1} parent=4 // pred_region
        // Predicated region
        $region21: #{reverse.1} parent=8 // pred_check
          _
        $region22: #{reverse.1} parent=8 // pred_check_branch
          %36 = sbr.rel (0) target = $region24
        $region23: #{reverse.1} parent=8 // pred_region
          loop: start=0, step=1, limit=1
          $region25: #{reverse.1} parent=23 // loop_pre_header
            _
          $region26: #{reverse.1} parent=23 // loop_header
            %s38 = sphi 0, %s42
            %p39 = scmp.ge.s32.totalorder %s38, 1
            %s43 = sphi %s0, %s0
            %s44 = sphi %s2, %s2
          $region27: #{reverse.1} parent=23 // loop_header_branch
            %41 = sbr.rel (%p39) target = $region31
          $region28: #{reverse.1} parent=23 // loop_body
            %v45 = vld [vmem:[%s43] sm:$0xff]
            %46 = vst [vmem:[%s44] sm:$0xff] %v45
            %v47 = vld [vmem:[%s43 + $0x8] sm:$0xff]
            %48 = vst [vmem:[%s44 + $0x10] sm:$0xff] %v47
            %v49 = vld [vmem:[%s43 + $0x10] sm:$0xff]
            %50 = vst [vmem:[%s44 + $0x20] sm:$0xff] %v49
            %v51 = vld [vmem:[%s43 + $0x18] sm:$0xff]
            %52 = vst [vmem:[%s44 + $0x30] sm:$0xff] %v51
            %v53 = vld [vmem:[%s43 + $0x20] sm:$0xff]
            %54 = vst [vmem:[%s44 + $0x40] sm:$0xff] %v53
            %v55 = vld [vmem:[%s43 + $0x28] sm:$0xff]
            %56 = vst [vmem:[%s44 + $0x50] sm:$0xff] %v55
            %v57 = vld [vmem:[%s43 + $0x30] sm:$0xff]
            %58 = vst [vmem:[%s44 + $0x60] sm:$0xff] %v57
            %v59 = vld [vmem:[%s43 + $0x38] sm:$0xff]
            %60 = vst [vmem:[%s44 + $0x70] sm:$0xff] %v59
          $region29: #{reverse.1} parent=23 // loop_footer
            %s42 = sadd.s32 1, %s38
          $region30: #{reverse.1} parent=23 // loop_footer_branch
            %37 = sbr.rel target = $region26
          $region31: #{reverse.1} parent=23 // loop_exit
            _
        $region24: #{reverse.1} parent=8 // pred_fallthru
          _
        // Predicated region
        $region32: #{reverse.1} parent=8 // pred_check
          _
        $region33: #{reverse.1} parent=8 // pred_check_branch
          %62 = sbr.rel target = $region35
        $region34: #{reverse.1} parent=8 // pred_region
          _
        $region35: #{reverse.1} parent=8 // pred_fallthru
          _
      $region9: #{reverse.1} parent=4 // pred_fallthru
        _
      // Predicated region
      $region10: #{reverse.1} parent=4 // pred_check
        _
      $region11: #{reverse.1} parent=4 // pred_check_branch
        %8 = sbr.rel target = $region13
      $region12: #{reverse.1} parent=4 // pred_region
        %s10 = ssub.s32 256, 1
        loop: start=0, step=1, limit=1
        $region14: #{reverse.1} parent=12 // loop_pre_header
          _
        $region15: #{reverse.1} parent=12 // loop_header
          %s12 = sphi 0, %s16
          %p13 = scmp.ge.s32.totalorder %s12, 1
          %s17 = sphi %s0, %s0
          %s18 = sphi %s2, %s2
        $region16: #{reverse.1} parent=12 // loop_header_branch
          %15 = sbr.rel (%p13) target = $region20
        $region17: #{reverse.1} parent=12 // loop_body
          %v19 = vld [vmem:[%s17] sm:%s10]
          %20 = vst [vmem:[%s18] sm:%s10] %v19
          %v21 = vld [vmem:[%s17 + $0x8] sm:%s10]
          %22 = vst [vmem:[%s18 + $0x10] sm:%s10] %v21
          %v23 = vld [vmem:[%s17 + $0x10] sm:%s10]
          %24 = vst [vmem:[%s18 + $0x20] sm:%s10] %v23
          %v25 = vld [vmem:[%s17 + $0x18] sm:%s10]
          %26 = vst [vmem:[%s18 + $0x30] sm:%s10] %v25
          %v27 = vld [vmem:[%s17 + $0x20] sm:%s10]
          %28 = vst [vmem:[%s18 + $0x40] sm:%s10] %v27
          %v29 = vld [vmem:[%s17 + $0x28] sm:%s10]
          %30 = vst [vmem:[%s18 + $0x50] sm:%s10] %v29
          %v31 = vld [vmem:[%s17 + $0x30] sm:%s10]
          %32 = vst [vmem:[%s18 + $0x60] sm:%s10] %v31
          %v33 = vld [vmem:[%s17 + $0x38] sm:%s10]
          %34 = vst [vmem:[%s18 + $0x70] sm:%s10] %v33
        $region18: #{reverse.1} parent=12 // loop_footer
          %s16 = sadd.s32 1, %s12
        $region19: #{reverse.1} parent=12 // loop_footer_branch
          %11 = sbr.rel target = $region15
        $region20: #{reverse.1} parent=12 // loop_exit
          _
      $region13: #{reverse.1} parent=4 // pred_fallthru
        _
    $region5: #{reverse.1} parent=1 // pred_fallthru
      _
    %63 = vnop
    %s64 = scalar_lea.vmem [#allocation0], 7
    %v65 = vld [vmem:[%s64] ss:$-1 sm:$0xff]
    %v66 = vrot.slane %v65, 1
    %67 = vst [vmem:[#allocation1] sm:$0xff] %v66
    %s68 = scalar_lea.vmem [#allocation0], 8
    %s69 = scalar_lea.vmem %s68, 7 [#allocation0]
    %v70 = vld [vmem:[%s69] ss:$-1 sm:$0xff]
    %v71 = vrot.slane %v70, 1
    %v72 = vlaneseq
    %v73 = vshrl.u32 %v72, 7
    %vm74 = vcmp.lt.s32.totalorder %v73, 7
    %75 = vst.msk [vmem:[#allocation1] sm:$0xff] %vm74, %v71
    %s76 = scalar_lea.vmem [#allocation1], 8
    %s77 = scalar_lea.vmem [#allocation0], 16
    %s78 = scalar_lea.vmem %s77, 7 [#allocation0]
    %v79 = vld [vmem:[%s78] ss:$-1 sm:$0xff]
    %v80 = vrot.slane %v79, 1
    %81 = vst [vmem:[%s76] sm:$0xff] %v80
    %s82 = scalar_lea.vmem %s77, 8 [#allocation0]
    %s83 = scalar_lea.vmem %s82, 7 [#allocation0]
    %v84 = vld [vmem:[%s83] ss:$-1 sm:$0xff]
    %v85 = vrot.slane %v84, 1
    %v86 = vlaneseq
    %v87 = vshrl.u32 %v86, 7
    %vm88 = vcmp.lt.s32.totalorder %v87, 7
    %89 = vst.msk [vmem:[%s76] sm:$0xff] %vm88, %v85
    %s90 = scalar_lea.vmem [#allocation1], 16
    %s91 = scalar_lea.vmem [#allocation0], 32
    %s92 = scalar_lea.vmem %s91, 7 [#allocation0]
    %v93 = vld [vmem:[%s92] ss:$-1 sm:$0xff]
    %v94 = vrot.slane %v93, 1
    %95 = vst [vmem:[%s90] sm:$0xff] %v94
    %s96 = scalar_lea.vmem %s91, 8 [#allocation0]
    %s97 = scalar_lea.vmem %s96, 7 [#allocation0]
    %v98 = vld [vmem:[%s97] ss:$-1 sm:$0xff]
    %v99 = vrot.slane %v98, 1
    %v100 = vlaneseq
    %v101 = vshrl.u32 %v100, 7
    %vm102 = vcmp.lt.s32.totalorder %v101, 7
    %103 = vst.msk [vmem:[%s90] sm:$0xff] %vm102, %v99
    %s104 = scalar_lea.vmem [#allocation1], 24
    %s105 = scalar_lea.vmem [#allocation0], 48
    %s106 = scalar_lea.vmem %s105, 7 [#allocation0]
    %v107 = vld [vmem:[%s106] ss:$-1 sm:$0xff]
    %v108 = vrot.slane %v107, 1
    %109 = vst [vmem:[%s104] sm:$0xff] %v108
    %s110 = scalar_lea.vmem %s105, 8 [#allocation0]
    %s111 = scalar_lea.vmem %s110, 7 [#allocation0]
    %v112 = vld [vmem:[%s111] ss:$-1 sm:$0xff]
    %v113 = vrot.slane %v112, 1
    %v114 = vlaneseq
    %v115 = vshrl.u32 %v114, 7
    %vm116 = vcmp.lt.s32.totalorder %v115, 7
    %117 = vst.msk [vmem:[%s104] sm:$0xff] %vm116, %v113
    %s118 = scalar_lea.vmem [#allocation1], 32
    %s119 = scalar_lea.vmem [#allocation0], 64
    %s120 = scalar_lea.vmem %s119, 7 [#allocation0]
    %v121 = vld [vmem:[%s120] ss:$-1 sm:$0xff]
    %v122 = vrot.slane %v121, 1
    %123 = vst [vmem:[%s118] sm:$0xff] %v122
    %s124 = scalar_lea.vmem %s119, 8 [#allocation0]
    %s125 = scalar_lea.vmem %s124, 7 [#allocation0]
    %v126 = vld [vmem:[%s125] ss:$-1 sm:$0xff]
    %v127 = vrot.slane %v126, 1
    %v128 = vlaneseq
    %v129 = vshrl.u32 %v128, 7
    %vm130 = vcmp.lt.s32.totalorder %v129, 7
    %131 = vst.msk [vmem:[%s118] sm:$0xff] %vm130, %v127
    %s132 = scalar_lea.vmem [#allocation1], 40
    %s133 = scalar_lea.vmem [#allocation0], 80
    %s134 = scalar_lea.vmem %s133, 7 [#allocation0]
    %v135 = vld [vmem:[%s134] ss:$-1 sm:$0xff]
    %v136 = vrot.slane %v135, 1
    %137 = vst [vmem:[%s132] sm:$0xff] %v136
    %s138 = scalar_lea.vmem %s133, 8 [#allocation0]
    %s139 = scalar_lea.vmem %s138, 7 [#allocation0]
    %v140 = vld [vmem:[%s139] ss:$-1 sm:$0xff]
    %v141 = vrot.slane %v140, 1
    %v142 = vlaneseq
    %v143 = vshrl.u32 %v142, 7
    %vm144 = vcmp.lt.s32.totalorder %v143, 7
    %145 = vst.msk [vmem:[%s132] sm:$0xff] %vm144, %v141
    %s146 = scalar_lea.vmem [#allocation1], 48
    %s147 = scalar_lea.vmem [#allocation0], 96
    %s148 = scalar_lea.vmem %s147, 7 [#allocation0]
    %v149 = vld [vmem:[%s148] ss:$-1 sm:$0xff]
    %v150 = vrot.slane %v149, 1
    %151 = vst [vmem:[%s146] sm:$0xff] %v150
    %s152 = scalar_lea.vmem %s147, 8 [#allocation0]
    %s153 = scalar_lea.vmem %s152, 7 [#allocation0]
    %v154 = vld [vmem:[%s153] ss:$-1 sm:$0xff]
    %v155 = vrot.slane %v154, 1
    %v156 = vlaneseq
    %v157 = vshrl.u32 %v156, 7
    %vm158 = vcmp.lt.s32.totalorder %v157, 7
    %159 = vst.msk [vmem:[%s146] sm:$0xff] %vm158, %v155
    %s160 = scalar_lea.vmem [#allocation1], 56
    %s161 = scalar_lea.vmem [#allocation0], 112
    %s162 = scalar_lea.vmem %s161, 7 [#allocation0]
    %v163 = vld [vmem:[%s162] ss:$-1 sm:$0xff]
    %v164 = vrot.slane %v163, 1
    %165 = vst [vmem:[%s160] sm:$0xff] %v164
    %s166 = scalar_lea.vmem %s161, 8 [#allocation0]
    %s167 = scalar_lea.vmem %s166, 7 [#allocation0]
    %v168 = vld [vmem:[%s167] ss:$-1 sm:$0xff]
    %v169 = vrot.slane %v168, 1
    %v170 = vlaneseq
    %v171 = vshrl.u32 %v170, 7
    %vm172 = vcmp.lt.s32.totalorder %v171, 7
    %173 = vst.msk [vmem:[%s160] sm:$0xff] %vm172, %v169
    // Predicated region
    $region36: #{reverse.1} parent=1 // pred_check
      _
    $region37: #{reverse.1} parent=1 // pred_check_branch
      %175 = sbr.rel (0) target = $region39
    $region38: #{reverse.1} parent=1 // pred_region
      // Predicated region
      $region40: #{reverse.1} parent=38 // pred_check
        _
      $region41: #{reverse.1} parent=38 // pred_check_branch
        %177 = sbr.rel (0) target = $region43
      $region42: #{reverse.1} parent=38 // pred_region
        // Predicated region
        $region55: #{reverse.1} parent=42 // pred_check
          _
        $region56: #{reverse.1} parent=42 // pred_check_branch
          %207 = sbr.rel (0) target = $region58
        $region57: #{reverse.1} parent=42 // pred_region
          loop: start=0, step=1, limit=1
          $region59: #{reverse.1} parent=57 // loop_pre_header
            _
          $region60: #{reverse.1} parent=57 // loop_header
            %s209 = sphi 0, %s213
            %p210 = scmp.ge.s32.totalorder %s209, 1
            %s214 = sphi [#allocation1], [#allocation1]
            %s215 = sphi %s1, %s1
          $region61: #{reverse.1} parent=57 // loop_header_branch
            %212 = sbr.rel (%p210) target = $region65
          $region62: #{reverse.1} parent=57 // loop_body
            %v216 = vld [vmem:[%s214] sm:$0xff]
            %217 = vst [vmem:[%s215] sm:$0xff] %v216
            %v218 = vld [vmem:[%s214 + $0x8] sm:$0xff]
            %219 = vst [vmem:[%s215 + $0x8] sm:$0xff] %v218
            %v220 = vld [vmem:[%s214 + $0x10] sm:$0xff]
            %221 = vst [vmem:[%s215 + $0x10] sm:$0xff] %v220
            %v222 = vld [vmem:[%s214 + $0x18] sm:$0xff]
            %223 = vst [vmem:[%s215 + $0x18] sm:$0xff] %v222
            %v224 = vld [vmem:[%s214 + $0x20] sm:$0xff]
            %225 = vst [vmem:[%s215 + $0x20] sm:$0xff] %v224
            %v226 = vld [vmem:[%s214 + $0x28] sm:$0xff]
            %227 = vst [vmem:[%s215 + $0x28] sm:$0xff] %v226
            %v228 = vld [vmem:[%s214 + $0x30] sm:$0xff]
            %229 = vst [vmem:[%s215 + $0x30] sm:$0xff] %v228
            %v230 = vld [vmem:[%s214 + $0x38] sm:$0xff]
            %231 = vst [vmem:[%s215 + $0x38] sm:$0xff] %v230
          $region63: #{reverse.1} parent=57 // loop_footer
            %s213 = sadd.s32 1, %s209
          $region64: #{reverse.1} parent=57 // loop_footer_branch
            %208 = sbr.rel target = $region60
          $region65: #{reverse.1} parent=57 // loop_exit
            _
        $region58: #{reverse.1} parent=42 // pred_fallthru
          _
        // Predicated region
        $region66: #{reverse.1} parent=42 // pred_check
          _
        $region67: #{reverse.1} parent=42 // pred_check_branch
          %233 = sbr.rel target = $region69
        $region68: #{reverse.1} parent=42 // pred_region
          _
        $region69: #{reverse.1} parent=42 // pred_fallthru
          _
      $region43: #{reverse.1} parent=38 // pred_fallthru
        _
      // Predicated region
      $region44: #{reverse.1} parent=38 // pred_check
        _
      $region45: #{reverse.1} parent=38 // pred_check_branch
        %179 = sbr.rel target = $region47
      $region46: #{reverse.1} parent=38 // pred_region
        %s181 = ssub.s32 256, 1
        loop: start=0, step=1, limit=1
        $region48: #{reverse.1} parent=46 // loop_pre_header
          _
        $region49: #{reverse.1} parent=46 // loop_header
          %s183 = sphi 0, %s187
          %p184 = scmp.ge.s32.totalorder %s183, 1
          %s188 = sphi [#allocation1], [#allocation1]
          %s189 = sphi %s1, %s1
        $region50: #{reverse.1} parent=46 // loop_header_branch
          %186 = sbr.rel (%p184) target = $region54
        $region51: #{reverse.1} parent=46 // loop_body
          %v190 = vld [vmem:[%s188] sm:%s181]
          %191 = vst [vmem:[%s189] sm:%s181] %v190
          %v192 = vld [vmem:[%s188 + $0x8] sm:%s181]
          %193 = vst [vmem:[%s189 + $0x8] sm:%s181] %v192
          %v194 = vld [vmem:[%s188 + $0x10] sm:%s181]
          %195 = vst [vmem:[%s189 + $0x10] sm:%s181] %v194
          %v196 = vld [vmem:[%s188 + $0x18] sm:%s181]
          %197 = vst [vmem:[%s189 + $0x18] sm:%s181] %v196
          %v198 = vld [vmem:[%s188 + $0x20] sm:%s181]
          %199 = vst [vmem:[%s189 + $0x20] sm:%s181] %v198
          %v200 = vld [vmem:[%s188 + $0x28] sm:%s181]
          %201 = vst [vmem:[%s189 + $0x28] sm:%s181] %v200
          %v202 = vld [vmem:[%s188 + $0x30] sm:%s181]
          %203 = vst [vmem:[%s189 + $0x30] sm:%s181] %v202
          %v204 = vld [vmem:[%s188 + $0x38] sm:%s181]
          %205 = vst [vmem:[%s189 + $0x38] sm:%s181] %v204
        $region52: #{reverse.1} parent=46 // loop_footer
          %s187 = sadd.s32 1, %s183
        $region53: #{reverse.1} parent=46 // loop_footer_branch
          %182 = sbr.rel target = $region49
        $region54: #{reverse.1} parent=46 // loop_exit
          _
      $region47: #{reverse.1} parent=38 // pred_fallthru
        _
    $region39: #{reverse.1} parent=1 // pred_fallthru
      _
    %234 = vnop

</llo_original>
